<compile_context>
chip_gen: v7x
topology: tpu7x:2x2x1
jax: 0.10.0
libtpu: 0.0.40
codegen_flags: <defaults>
</compile_context>

<pallas_src>
import functools
import math

import jax
import jax.numpy as jnp
from jax import lax
from jax.experimental import pallas as pl
from jax.experimental.pallas import tpu as pltpu


def _ceil_to(x, m):
    return -(-x // m) * m


def _log_sinkhorn_kernel(score_ref, rmask_ref, cmask_ref, out_ref, *,
                         num_iterations, neg_fill):
    """One grid step: TB independent Sinkhorn problems, carried in vregs.

    score_ref : (TB, N, M) f32  raw log scores (unpadded)
    rmask_ref : (TB, N, 1) f32  1.0 = valid row
    cmask_ref : (TB, 1, M) f32  1.0 = valid col
    out_ref   : (TB, N, M) f32  log matching scores
    """
    tb, n, m = score_ref.shape

    score = score_ref[...]
    valid = jnp.logical_and(rmask_ref[...] > 0.5, cmask_ref[...] > 0.5)
    core = jnp.where(valid, score, jnp.float32(neg_fill))     # (TB, N, M)
    drow = jnp.zeros((tb, 1, m), jnp.float32)                 # dustbin row
    dcol = jnp.zeros((tb, n, 1), jnp.float32)                 # dustbin col
    # The dustbin corner never participates in either normalization nor in the
    # output, so it is not carried at all.

    def _iteration(core, drow, dcol):
        # Row normalization: logsumexp over [core | dustbin column], axis=2.
        mx = jnp.maximum(jnp.max(core, axis=2, keepdims=True), dcol)
        s = jnp.sum(jnp.exp(core - mx), axis=2, keepdims=True) + jnp.exp(dcol - mx)
        lse = mx + jnp.log(s)
        core = core - lse
        dcol = dcol - lse
        # Column normalization: logsumexp over [core ; dustbin row], axis=1.
        mx = jnp.maximum(jnp.max(core, axis=1, keepdims=True), drow)
        s = jnp.sum(jnp.exp(core - mx), axis=1, keepdims=True) + jnp.exp(drow - mx)
        lse = mx + jnp.log(s)
        core = core - lse
        drow = drow - lse
        return core, drow, dcol

    if num_iterations <= 8:
        # Tiny static trip count and a small carry: full Python unroll.
        for _ in range(num_iterations):
            core, drow, dcol = _iteration(core, drow, dcol)
    else:
        core, drow, dcol = lax.fori_loop(
            0, num_iterations,
            lambda _, c: _iteration(*c),
            (core, drow, dcol),
            unroll=2)

    out_ref[...] = core.astype(out_ref.dtype)   # single full-block store


def _pick_block_batch(b, n, m, carry_budget_bytes=48 * 1024):
    """Largest divisor of B whose per-step carry stays ~12 vregs.

    Keeps >= 2 grid steps when B >= 2 (prefer an even step count) so both
    v7x TensorCores receive balanced work.
    """
    per_elem = _ceil_to(n, 8) * _ceil_to(m, 128) * 4   # layout footprint of core
    cap = max(1, carry_budget_bytes // per_elem)
    if b >= 2:
        cap = min(cap, b // 2)
    cap = min(cap, b)
    divisors = [d for d in range(1, cap + 1) if b % d == 0]
    even_steps = [d for d in divisors if (b // d) % 2 == 0]
    return max(even_steps) if even_steps else max(divisors)


def log_sinkhorn(score_mat, row_masks=None, col_masks=None,
                 num_iterations=5, inf=1.0e12, block_batch=None):
    """Pallas LogSinkhorn forward.  score_mat: (B, N, M) float -> (B, N, M)."""
    score_mat = jnp.asarray(score_mat, jnp.float32)
    b, n, m = score_mat.shape

    if row_masks is None:
        row_masks = jnp.ones((b, n), dtype=jnp.float32)
    if col_masks is None:
        col_masks = jnp.ones((b, m), dtype=jnp.float32)
    rm = jnp.asarray(row_masks).astype(jnp.float32).reshape(b, n, 1)
    cm = jnp.asarray(col_masks).astype(jnp.float32).reshape(b, 1, m)

    inf = float(inf)
    if not math.isfinite(inf):
        # The module's default sentinel (1e12) is finite; a true -inf would put
        # NaNs in fully-masked rows.  Clamp to the finite default.
        inf = 1.0e12

    tb = block_batch if block_batch is not None else _pick_block_batch(b, n, m)
    assert b % tb == 0, "block_batch must divide the batch size"
    grid = (b // tb,)

    kernel = functools.partial(_log_sinkhorn_kernel,
                               num_iterations=int(num_iterations),
                               neg_fill=-inf)

    # VMEM budgeting (layout-padded tile footprint); raise the scoped limit
    # only when double-buffered in/out tiles would exceed the 32 MiB default.
    tile_bytes = tb * _ceil_to(n, 8) * _ceil_to(m, 128) * 4
    vmem_est = 2 * 2 * tile_bytes + 4 * tile_bytes
    cp_kwargs = dict(dimension_semantics=("parallel",))
    if vmem_est > (32 << 20):
        cp_kwargs["vmem_limit_bytes"] = int(min(vmem_est + (8 << 20), 120 << 20))

    out = pl.pallas_call(
        kernel,
        out_shape=jax.ShapeDtypeStruct((b, n, m), jnp.float32),
        grid=grid,
        in_specs=[
            pl.BlockSpec((tb, n, m), lambda i: (i, 0, 0)),
            pl.BlockSpec((tb, n, 1), lambda i: (i, 0, 0)),
            pl.BlockSpec((tb, 1, m), lambda i: (i, 0, 0)),
        ],
        out_specs=pl.BlockSpec((tb, n, m), lambda i: (i, 0, 0)),
        compiler_params=pltpu.CompilerParams(**cp_kwargs),
        cost_estimate=pl.CostEstimate(
            flops=int(8 * b * num_iterations * n * m),
            transcendentals=int(b * num_iterations * (2 * n * m + 2 * n + 2 * m)),
            bytes_accessed=int(4 * (2 * b * n * m + b * n + b * m))),
    )(score_mat, rm, cm)
    return out


def log_sinkhorn_ref(score_mat, row_masks, col_masks, num_iterations, inf=1.0e12):
    """Pure-JAX reference mirroring the PyTorch module exactly."""
    mask = jnp.logical_and(row_masks[:, :, None], col_masks[:, None, :])
    score = jnp.where(mask, score_mat, jnp.full_like(score_mat, -inf))
    padded = jnp.pad(score, ((0, 0), (0, 1), (0, 1)))
    for _ in range(num_iterations):
        rows = padded[:, :-1, :]
        rows = rows - jax.scipy.special.logsumexp(rows, axis=2, keepdims=True)
        padded = jnp.concatenate([rows, padded[:, -1:, :]], axis=1)
        cols = padded[:, :, :-1]
        cols = cols - jax.scipy.special.logsumexp(cols, axis=1, keepdims=True)
        padded = jnp.concatenate([cols, padded[:, :, -1:]], axis=2)
    return padded[:, :-1, :-1]


if __name__ == "__main__":
    key = jax.random.PRNGKey(0)
    B, N, M = 2, 8, 16
    num_iterations = 5

    k1, k2, k3 = jax.random.split(key, 3)
    score_mat = jax.random.normal(k1, (B, N, M), dtype=jnp.float32)
    row_masks = jax.random.uniform(k2, (B, N)) > 0.2   # some invalid rows
    col_masks = jax.random.uniform(k3, (B, M)) > 0.2   # some invalid cols

    out = log_sinkhorn(score_mat, row_masks, col_masks,
                       num_iterations=num_iterations)
    out = jax.block_until_ready(out)

    ref = log_sinkhorn_ref(score_mat, row_masks, col_masks,
                           num_iterations=num_iterations)
    assert out.shape == (B, N, M)
    assert jnp.allclose(out, ref, atol=1e-4, rtol=1e-4), "mismatch vs reference"

    print("KERNEL_OK")
</pallas_src>

<mosaic_0001>
module attributes {stable_mosaic.version = 11 : i64} {
  func.func @_log_sinkhorn_kernel(%arg0: i32, %arg1: memref<1x8x16xf32, #tpu.memory_space<vmem>>, %arg2: memref<1x8x1xf32, #tpu.memory_space<vmem>>, %arg3: memref<1x1x16xf32, #tpu.memory_space<vmem>>, %arg4: memref<1x8x16xf32, #tpu.memory_space<vmem>>) attributes {dimension_semantics = [#tpu.dimension_semantics<parallel>], iteration_bounds = array<i64: 2>, scalar_prefetch = 0 : i64, scratch_operands = 0 : i64, tpu.core_type = #tpu.core_type<tc>, window_params = [{transform_indices = @transform_0, window_bounds = array<i64: 1, 8, 16>}, {transform_indices = @transform_1, window_bounds = array<i64: 1, 8, 1>}, {transform_indices = @transform_2, window_bounds = array<i64: 1, 1, 16>}, {transform_indices = @transform_3, window_bounds = array<i64: 1, 8, 16>}]} {
    %c0 = arith.constant 0 : index
    %c0_0 = arith.constant 0 : index
    %c0_1 = arith.constant 0 : index
    %0 = vector.load %arg1[%c0, %c0_0, %c0_1] : memref<1x8x16xf32, #tpu.memory_space<vmem>>, vector<1x8x16xf32>
    %c0_2 = arith.constant 0 : index
    %c0_3 = arith.constant 0 : index
    %c0_4 = arith.constant 0 : index
    %1 = vector.load %arg2[%c0_2, %c0_3, %c0_4] : memref<1x8x1xf32, #tpu.memory_space<vmem>>, vector<1x8x1xf32>
    %cst = arith.constant 5.000000e-01 : f32
    %2 = vector.broadcast %cst : f32 to vector<1x8x1xf32>
    %3 = arith.cmpf ogt, %1, %2 : vector<1x8x1xf32>
    %c0_5 = arith.constant 0 : index
    %c0_6 = arith.constant 0 : index
    %c0_7 = arith.constant 0 : index
    %4 = vector.load %arg3[%c0_5, %c0_6, %c0_7] : memref<1x1x16xf32, #tpu.memory_space<vmem>>, vector<1x1x16xf32>
    %cst_8 = arith.constant 5.000000e-01 : f32
    %5 = vector.broadcast %cst_8 : f32 to vector<1x1x16xf32>
    %6 = arith.cmpf ogt, %4, %5 : vector<1x1x16xf32>
    %7 = vector.broadcast %3 : vector<1x8x1xi1> to vector<1x8x16xi1>
    %8 = vector.broadcast %6 : vector<1x1x16xi1> to vector<1x8x16xi1>
    %9 = arith.andi %7, %8 : vector<1x8x16xi1>
    %cst_9 = arith.constant -9.99999995E+11 : f32
    %10 = vector.broadcast %cst_9 : f32 to vector<1x8x16xf32>
    %11 = arith.select %9, %0, %10 : vector<1x8x16xi1>, vector<1x8x16xf32>
    %cst_10 = arith.constant 0.000000e+00 : f32
    %12 = vector.broadcast %cst_10 : f32 to vector<1x1x16xf32>
    %cst_11 = arith.constant 0.000000e+00 : f32
    %13 = vector.broadcast %cst_11 : f32 to vector<1x8x1xf32>
    %cst_12 = arith.constant dense<0xFF800000> : vector<1x8xf32>
    %14 = vector.multi_reduction <maximumf>, %11, %cst_12 [2] : vector<1x8x16xf32> to vector<1x8xf32>
    %15 = vector.shape_cast %14 : vector<1x8xf32> to vector<1x8x1xf32>
    %16 = arith.maximumf %15, %13 : vector<1x8x1xf32>
    %17 = vector.broadcast %16 : vector<1x8x1xf32> to vector<1x8x16xf32>
    %18 = arith.subf %11, %17 : vector<1x8x16xf32>
    %19 = math.exp %18 : vector<1x8x16xf32>
    %cst_13 = arith.constant dense<0.000000e+00> : vector<1x8xf32>
    %20 = vector.multi_reduction <add>, %19, %cst_13 [2] : vector<1x8x16xf32> to vector<1x8xf32>
    %21 = vector.shape_cast %20 : vector<1x8xf32> to vector<1x8x1xf32>
    %22 = arith.subf %13, %16 : vector<1x8x1xf32>
    %23 = math.exp %22 : vector<1x8x1xf32>
    %24 = arith.addf %21, %23 : vector<1x8x1xf32>
    %25 = math.log %24 : vector<1x8x1xf32>
    %26 = arith.addf %16, %25 : vector<1x8x1xf32>
    %27 = vector.broadcast %26 : vector<1x8x1xf32> to vector<1x8x16xf32>
    %28 = arith.subf %11, %27 : vector<1x8x16xf32>
    %29 = arith.subf %13, %26 : vector<1x8x1xf32>
    %cst_14 = arith.constant dense<0xFF800000> : vector<1x16xf32>
    %30 = vector.multi_reduction <maximumf>, %28, %cst_14 [1] : vector<1x8x16xf32> to vector<1x16xf32>
    %31 = vector.shape_cast %30 : vector<1x16xf32> to vector<1x1x16xf32>
    %32 = arith.maximumf %31, %12 : vector<1x1x16xf32>
    %33 = vector.broadcast %32 : vector<1x1x16xf32> to vector<1x8x16xf32>
    %34 = arith.subf %28, %33 : vector<1x8x16xf32>
    %35 = math.exp %34 : vector<1x8x16xf32>
    %cst_15 = arith.constant dense<0.000000e+00> : vector<1x16xf32>
    %36 = vector.multi_reduction <add>, %35, %cst_15 [1] : vector<1x8x16xf32> to vector<1x16xf32>
    %37 = vector.shape_cast %36 : vector<1x16xf32> to vector<1x1x16xf32>
    %38 = arith.subf %12, %32 : vector<1x1x16xf32>
    %39 = math.exp %38 : vector<1x1x16xf32>
    %40 = arith.addf %37, %39 : vector<1x1x16xf32>
    %41 = math.log %40 : vector<1x1x16xf32>
    %42 = arith.addf %32, %41 : vector<1x1x16xf32>
    %43 = vector.broadcast %42 : vector<1x1x16xf32> to vector<1x8x16xf32>
    %44 = arith.subf %28, %43 : vector<1x8x16xf32>
    %45 = arith.subf %12, %42 : vector<1x1x16xf32>
    %cst_16 = arith.constant dense<0xFF800000> : vector<1x8xf32>
    %46 = vector.multi_reduction <maximumf>, %44, %cst_16 [2] : vector<1x8x16xf32> to vector<1x8xf32>
    %47 = vector.shape_cast %46 : vector<1x8xf32> to vector<1x8x1xf32>
    %48 = arith.maximumf %47, %29 : vector<1x8x1xf32>
    %49 = vector.broadcast %48 : vector<1x8x1xf32> to vector<1x8x16xf32>
    %50 = arith.subf %44, %49 : vector<1x8x16xf32>
    %51 = math.exp %50 : vector<1x8x16xf32>
    %cst_17 = arith.constant dense<0.000000e+00> : vector<1x8xf32>
    %52 = vector.multi_reduction <add>, %51, %cst_17 [2] : vector<1x8x16xf32> to vector<1x8xf32>
    %53 = vector.shape_cast %52 : vector<1x8xf32> to vector<1x8x1xf32>
    %54 = arith.subf %29, %48 : vector<1x8x1xf32>
    %55 = math.exp %54 : vector<1x8x1xf32>
    %56 = arith.addf %53, %55 : vector<1x8x1xf32>
    %57 = math.log %56 : vector<1x8x1xf32>
    %58 = arith.addf %48, %57 : vector<1x8x1xf32>
    %59 = vector.broadcast %58 : vector<1x8x1xf32> to vector<1x8x16xf32>
    %60 = arith.subf %44, %59 : vector<1x8x16xf32>
    %61 = arith.subf %29, %58 : vector<1x8x1xf32>
    %cst_18 = arith.constant dense<0xFF800000> : vector<1x16xf32>
    %62 = vector.multi_reduction <maximumf>, %60, %cst_18 [1] : vector<1x8x16xf32> to vector<1x16xf32>
    %63 = vector.shape_cast %62 : vector<1x16xf32> to vector<1x1x16xf32>
    %64 = arith.maximumf %63, %45 : vector<1x1x16xf32>
    %65 = vector.broadcast %64 : vector<1x1x16xf32> to vector<1x8x16xf32>
    %66 = arith.subf %60, %65 : vector<1x8x16xf32>
    %67 = math.exp %66 : vector<1x8x16xf32>
    %cst_19 = arith.constant dense<0.000000e+00> : vector<1x16xf32>
    %68 = vector.multi_reduction <add>, %67, %cst_19 [1] : vector<1x8x16xf32> to vector<1x16xf32>
    %69 = vector.shape_cast %68 : vector<1x16xf32> to vector<1x1x16xf32>
    %70 = arith.subf %45, %64 : vector<1x1x16xf32>
    %71 = math.exp %70 : vector<1x1x16xf32>
    %72 = arith.addf %69, %71 : vector<1x1x16xf32>
    %73 = math.log %72 : vector<1x1x16xf32>
    %74 = arith.addf %64, %73 : vector<1x1x16xf32>
    %75 = vector.broadcast %74 : vector<1x1x16xf32> to vector<1x8x16xf32>
    %76 = arith.subf %60, %75 : vector<1x8x16xf32>
    %77 = arith.subf %45, %74 : vector<1x1x16xf32>
    %cst_20 = arith.constant dense<0xFF800000> : vector<1x8xf32>
    %78 = vector.multi_reduction <maximumf>, %76, %cst_20 [2] : vector<1x8x16xf32> to vector<1x8xf32>
    %79 = vector.shape_cast %78 : vector<1x8xf32> to vector<1x8x1xf32>
    %80 = arith.maximumf %79, %61 : vector<1x8x1xf32>
    %81 = vector.broadcast %80 : vector<1x8x1xf32> to vector<1x8x16xf32>
    %82 = arith.subf %76, %81 : vector<1x8x16xf32>
    %83 = math.exp %82 : vector<1x8x16xf32>
    %cst_21 = arith.constant dense<0.000000e+00> : vector<1x8xf32>
    %84 = vector.multi_reduction <add>, %83, %cst_21 [2] : vector<1x8x16xf32> to vector<1x8xf32>
    %85 = vector.shape_cast %84 : vector<1x8xf32> to vector<1x8x1xf32>
    %86 = arith.subf %61, %80 : vector<1x8x1xf32>
    %87 = math.exp %86 : vector<1x8x1xf32>
    %88 = arith.addf %85, %87 : vector<1x8x1xf32>
    %89 = math.log %88 : vector<1x8x1xf32>
    %90 = arith.addf %80, %89 : vector<1x8x1xf32>
    %91 = vector.broadcast %90 : vector<1x8x1xf32> to vector<1x8x16xf32>
    %92 = arith.subf %76, %91 : vector<1x8x16xf32>
    %93 = arith.subf %61, %90 : vector<1x8x1xf32>
    %cst_22 = arith.constant dense<0xFF800000> : vector<1x16xf32>
    %94 = vector.multi_reduction <maximumf>, %92, %cst_22 [1] : vector<1x8x16xf32> to vector<1x16xf32>
    %95 = vector.shape_cast %94 : vector<1x16xf32> to vector<1x1x16xf32>
    %96 = arith.maximumf %95, %77 : vector<1x1x16xf32>
    %97 = vector.broadcast %96 : vector<1x1x16xf32> to vector<1x8x16xf32>
    %98 = arith.subf %92, %97 : vector<1x8x16xf32>
    %99 = math.exp %98 : vector<1x8x16xf32>
    %cst_23 = arith.constant dense<0.000000e+00> : vector<1x16xf32>
    %100 = vector.multi_reduction <add>, %99, %cst_23 [1] : vector<1x8x16xf32> to vector<1x16xf32>
    %101 = vector.shape_cast %100 : vector<1x16xf32> to vector<1x1x16xf32>
    %102 = arith.subf %77, %96 : vector<1x1x16xf32>
    %103 = math.exp %102 : vector<1x1x16xf32>
    %104 = arith.addf %101, %103 : vector<1x1x16xf32>
    %105 = math.log %104 : vector<1x1x16xf32>
    %106 = arith.addf %96, %105 : vector<1x1x16xf32>
    %107 = vector.broadcast %106 : vector<1x1x16xf32> to vector<1x8x16xf32>
    %108 = arith.subf %92, %107 : vector<1x8x16xf32>
    %109 = arith.subf %77, %106 : vector<1x1x16xf32>
    %cst_24 = arith.constant dense<0xFF800000> : vector<1x8xf32>
    %110 = vector.multi_reduction <maximumf>, %108, %cst_24 [2] : vector<1x8x16xf32> to vector<1x8xf32>
    %111 = vector.shape_cast %110 : vector<1x8xf32> to vector<1x8x1xf32>
    %112 = arith.maximumf %111, %93 : vector<1x8x1xf32>
    %113 = vector.broadcast %112 : vector<1x8x1xf32> to vector<1x8x16xf32>
    %114 = arith.subf %108, %113 : vector<1x8x16xf32>
    %115 = math.exp %114 : vector<1x8x16xf32>
    %cst_25 = arith.constant dense<0.000000e+00> : vector<1x8xf32>
    %116 = vector.multi_reduction <add>, %115, %cst_25 [2] : vector<1x8x16xf32> to vector<1x8xf32>
    %117 = vector.shape_cast %116 : vector<1x8xf32> to vector<1x8x1xf32>
    %118 = arith.subf %93, %112 : vector<1x8x1xf32>
    %119 = math.exp %118 : vector<1x8x1xf32>
    %120 = arith.addf %117, %119 : vector<1x8x1xf32>
    %121 = math.log %120 : vector<1x8x1xf32>
    %122 = arith.addf %112, %121 : vector<1x8x1xf32>
    %123 = vector.broadcast %122 : vector<1x8x1xf32> to vector<1x8x16xf32>
    %124 = arith.subf %108, %123 : vector<1x8x16xf32>
    %125 = arith.subf %93, %122 : vector<1x8x1xf32>
    %cst_26 = arith.constant dense<0xFF800000> : vector<1x16xf32>
    %126 = vector.multi_reduction <maximumf>, %124, %cst_26 [1] : vector<1x8x16xf32> to vector<1x16xf32>
    %127 = vector.shape_cast %126 : vector<1x16xf32> to vector<1x1x16xf32>
    %128 = arith.maximumf %127, %109 : vector<1x1x16xf32>
    %129 = vector.broadcast %128 : vector<1x1x16xf32> to vector<1x8x16xf32>
    %130 = arith.subf %124, %129 : vector<1x8x16xf32>
    %131 = math.exp %130 : vector<1x8x16xf32>
    %cst_27 = arith.constant dense<0.000000e+00> : vector<1x16xf32>
    %132 = vector.multi_reduction <add>, %131, %cst_27 [1] : vector<1x8x16xf32> to vector<1x16xf32>
    %133 = vector.shape_cast %132 : vector<1x16xf32> to vector<1x1x16xf32>
    %134 = arith.subf %109, %128 : vector<1x1x16xf32>
    %135 = math.exp %134 : vector<1x1x16xf32>
    %136 = arith.addf %133, %135 : vector<1x1x16xf32>
    %137 = math.log %136 : vector<1x1x16xf32>
    %138 = arith.addf %128, %137 : vector<1x1x16xf32>
    %139 = vector.broadcast %138 : vector<1x1x16xf32> to vector<1x8x16xf32>
    %140 = arith.subf %124, %139 : vector<1x8x16xf32>
    %141 = arith.subf %109, %138 : vector<1x1x16xf32>
    %cst_28 = arith.constant dense<0xFF800000> : vector<1x8xf32>
    %142 = vector.multi_reduction <maximumf>, %140, %cst_28 [2] : vector<1x8x16xf32> to vector<1x8xf32>
    %143 = vector.shape_cast %142 : vector<1x8xf32> to vector<1x8x1xf32>
    %144 = arith.maximumf %143, %125 : vector<1x8x1xf32>
    %145 = vector.broadcast %144 : vector<1x8x1xf32> to vector<1x8x16xf32>
    %146 = arith.subf %140, %145 : vector<1x8x16xf32>
    %147 = math.exp %146 : vector<1x8x16xf32>
    %cst_29 = arith.constant dense<0.000000e+00> : vector<1x8xf32>
    %148 = vector.multi_reduction <add>, %147, %cst_29 [2] : vector<1x8x16xf32> to vector<1x8xf32>
    %149 = vector.shape_cast %148 : vector<1x8xf32> to vector<1x8x1xf32>
    %150 = arith.subf %125, %144 : vector<1x8x1xf32>
    %151 = math.exp %150 : vector<1x8x1xf32>
    %152 = arith.addf %149, %151 : vector<1x8x1xf32>
    %153 = math.log %152 : vector<1x8x1xf32>
    %154 = arith.addf %144, %153 : vector<1x8x1xf32>
    %155 = vector.broadcast %154 : vector<1x8x1xf32> to vector<1x8x16xf32>
    %156 = arith.subf %140, %155 : vector<1x8x16xf32>
    %cst_30 = arith.constant dense<0xFF800000> : vector<1x16xf32>
    %157 = vector.multi_reduction <maximumf>, %156, %cst_30 [1] : vector<1x8x16xf32> to vector<1x16xf32>
    %158 = vector.shape_cast %157 : vector<1x16xf32> to vector<1x1x16xf32>
    %159 = arith.maximumf %158, %141 : vector<1x1x16xf32>
    %160 = vector.broadcast %159 : vector<1x1x16xf32> to vector<1x8x16xf32>
    %161 = arith.subf %156, %160 : vector<1x8x16xf32>
    %162 = math.exp %161 : vector<1x8x16xf32>
    %cst_31 = arith.constant dense<0.000000e+00> : vector<1x16xf32>
    %163 = vector.multi_reduction <add>, %162, %cst_31 [1] : vector<1x8x16xf32> to vector<1x16xf32>
    %164 = vector.shape_cast %163 : vector<1x16xf32> to vector<1x1x16xf32>
    %165 = arith.subf %141, %159 : vector<1x1x16xf32>
    %166 = math.exp %165 : vector<1x1x16xf32>
    %167 = arith.addf %164, %166 : vector<1x1x16xf32>
    %168 = math.log %167 : vector<1x1x16xf32>
    %169 = arith.addf %159, %168 : vector<1x1x16xf32>
    %170 = vector.broadcast %169 : vector<1x1x16xf32> to vector<1x8x16xf32>
    %171 = arith.subf %156, %170 : vector<1x8x16xf32>
    %c0_32 = arith.constant 0 : index
    %c0_33 = arith.constant 0 : index
    %c0_34 = arith.constant 0 : index
    %172 = vector.load %arg4[%c0_32, %c0_33, %c0_34] : memref<1x8x16xf32, #tpu.memory_space<vmem>>, vector<1x8x16xf32>
    tpu.vector_store %arg4[%c0_32, %c0_33, %c0_34], %171 {strides = array<i32>} : memref<1x8x16xf32, #tpu.memory_space<vmem>>, vector<1x8x16xf32>,
    return
  }
  func.func @transform_0(%arg0: i32) -> (i32, i32, i32) {
    %c0_i32 = arith.constant 0 : i32
    %c0_i32_0 = arith.constant 0 : i32
    %c0_i32_1 = arith.constant 0 : i32
    return %arg0, %c0_i32, %c0_i32_0 : i32, i32, i32
  }
  func.func @transform_1(%arg0: i32) -> (i32, i32, i32) {
    %c0_i32 = arith.constant 0 : i32
    %c0_i32_0 = arith.constant 0 : i32
    %c0_i32_1 = arith.constant 0 : i32
    return %arg0, %c0_i32, %c0_i32_0 : i32, i32, i32
  }
  func.func @transform_2(%arg0: i32) -> (i32, i32, i32) {
    %c0_i32 = arith.constant 0 : i32
    %c0_i32_0 = arith.constant 0 : i32
    %c0_i32_1 = arith.constant 0 : i32
    return %arg0, %c0_i32, %c0_i32_0 : i32, i32, i32
  }
  func.func @transform_3(%arg0: i32) -> (i32, i32, i32) {
    %c0_i32 = arith.constant 0 : i32
    %c0_i32_0 = arith.constant 0 : i32
    %c0_i32_1 = arith.constant 0 : i32
    return %arg0, %c0_i32, %c0_i32_0 : i32, i32, i32
  }
}

</mosaic_0001>

<llo_original>
// kernel: tpu_custom_call.1
$region0: #{tpu_custom_call.1}
  #allocation0 [shape = 'u32[]', space=smem, size = 0x4, offset = 0x4, fixed_abs, tag = 'smem constant byte address 0x4 - core index']
  #allocation1 [shape = 'u32[144,128]{1,0:T(1,128)}', space=vmem, size = 0x12000, scoped, tag = 'internal scratch']
  %s0 = inlined_call_operand.vmem [shape: f32[2,8,16], index: 0, kind: input, shape index: {}]
  %s1 = inlined_call_operand.vmem [shape: f32[2,8,1], index: 1, kind: input, shape index: {}]
  %s2 = inlined_call_operand.vmem [shape: f32[2,1,16], index: 2, kind: input, shape index: {}]
  %s3 = inlined_call_operand.hbm [shape: f32[2,8,16], index: 3, kind: output, shape index: {}]
  %s4 = sld [smem:[#allocation0]]
  $region45: #{tpu_custom_call.1} parent=0
    _
  %s6 = ssub.s32 1, %s4
  %s7 = scalar_select 0, %s6, %s4
  $region1: #{tpu_custom_call.1} parent=0
    #allocation2 [shape = 'u8[8192]{0}', space=vmem, size = 0x2000, scoped, tag = 'output window, operand 0']
    #allocation3 [shape = 's32[2]{0}', space=sflag, size = 0x8, scoped, tag = 'scoped memory for tpu_custom_call.1']
    %8 = vsyncpa [#allocation3], 0
    %s9 = scalar_lea.sflag [#allocation3], 1
    %10 = vsyncpa %s9, 0
    loop: start=0, step=1, limit=4
    $region2: #{tpu_custom_call.1} parent=1 // loop_pre_header
      _
    $region3: #{tpu_custom_call.1} parent=1 // loop_header
      %s12 = sphi 0, %s16
      %p13 = scmp.ge.s32.totalorder %s12, 4
      %s22 = sphi 0, %s24
      %s25 = sphi 0, %s22
      %s26 = sphi 0, %s25
      %s42 = sphi 0, %s26
      %s48 = sphi 0, %s50
      %s51 = sphi 0, %s48
      %s52 = sphi 0, %s51
      %s68 = sphi 0, %s52
      %s74 = sphi 0, %s76
      %s77 = sphi 0, %s74
      %s78 = sphi 0, %s77
      %s94 = sphi 0, %s78
      %s100 = sphi 0, %s102
      %s103 = sphi 0, %s100
      %s104 = sphi 0, %s103
      %s120 = sphi 0, %s104
    $region4: #{tpu_custom_call.1} parent=1 // loop_header_branch
      %15 = sbr.rel (%p13) target = $region8
    $region5: #{tpu_custom_call.1} parent=1 // loop_body
      %s17 = ssub.s32 %s12, 1
      %s18 = ssub.s32 %s12, 2
      %s19 = sadd.s32 %s12, 1
      %s20 = ssub.s32 %s12, %s19
      %p21 = scmp.eq.s32.totalorder %s20, 0
      %s23 = sadd.s32 %s22, 1
      %s24 = scalar_select %p21, %s22, %s23
      %p27 = pneg %p21
      %p28 = scmp.eq.s32.totalorder %s12, 1
      %p29 = por %p27, %p28
      %p30 = scmp.ne.s32.totalorder %s22, %s25
      %p31 = scmp.eq.s32.totalorder %s12, 0
      %p32 = por %p30, %p31
      %p33 = scmp.ne.s32.totalorder %s22, %s25
      %p34 = scmp.eq.s32.totalorder %s17, 1
      %p35 = por %p33, %p34
      %p36 = scmp.ne.s32.totalorder %s25, %s26
      %p37 = scmp.eq.s32.totalorder %s17, 0
      %p38 = por %p36, %p37
      %p39 = scmp.ne.s32.totalorder %s25, %s26
      %p40 = scmp.eq.s32.totalorder %s18, 1
      %p41 = por %p39, %p40
      %p43 = scmp.ne.s32.totalorder %s26, %s42
      %p44 = scmp.eq.s32.totalorder %s18, 0
      %p45 = por %p43, %p44
      %s46 = ssub.s32 %s12, %s19
      %p47 = scmp.eq.s32.totalorder %s46, 0
      %s49 = sadd.s32 %s48, 1
      %s50 = scalar_select %p47, %s48, %s49
      %p53 = pneg %p47
      %p54 = scmp.eq.s32.totalorder %s12, 1
      %p55 = por %p53, %p54
      %p56 = scmp.ne.s32.totalorder %s48, %s51
      %p57 = scmp.eq.s32.totalorder %s12, 0
      %p58 = por %p56, %p57
      %p59 = scmp.ne.s32.totalorder %s48, %s51
      %p60 = scmp.eq.s32.totalorder %s17, 1
      %p61 = por %p59, %p60
      %p62 = scmp.ne.s32.totalorder %s51, %s52
      %p63 = scmp.eq.s32.totalorder %s17, 0
      %p64 = por %p62, %p63
      %p65 = scmp.ne.s32.totalorder %s51, %s52
      %p66 = scmp.eq.s32.totalorder %s18, 1
      %p67 = por %p65, %p66
      %p69 = scmp.ne.s32.totalorder %s52, %s68
      %p70 = scmp.eq.s32.totalorder %s18, 0
      %p71 = por %p69, %p70
      %s72 = ssub.s32 %s12, %s19
      %p73 = scmp.eq.s32.totalorder %s72, 0
      %s75 = sadd.s32 %s74, 1
      %s76 = scalar_select %p73, %s74, %s75
      %p79 = pneg %p73
      %p80 = scmp.eq.s32.totalorder %s12, 1
      %p81 = por %p79, %p80
      %p82 = scmp.ne.s32.totalorder %s74, %s77
      %p83 = scmp.eq.s32.totalorder %s12, 0
      %p84 = por %p82, %p83
      %p85 = scmp.ne.s32.totalorder %s74, %s77
      %p86 = scmp.eq.s32.totalorder %s17, 1
      %p87 = por %p85, %p86
      %p88 = scmp.ne.s32.totalorder %s77, %s78
      %p89 = scmp.eq.s32.totalorder %s17, 0
      %p90 = por %p88, %p89
      %p91 = scmp.ne.s32.totalorder %s77, %s78
      %p92 = scmp.eq.s32.totalorder %s18, 1
      %p93 = por %p91, %p92
      %p95 = scmp.ne.s32.totalorder %s78, %s94
      %p96 = scmp.eq.s32.totalorder %s18, 0
      %p97 = por %p95, %p96
      %s98 = ssub.s32 %s12, %s19
      %p99 = scmp.eq.s32.totalorder %s98, 0
      %s101 = sadd.s32 %s100, 1
      %s102 = scalar_select %p99, %s100, %s101
      %p105 = pneg %p99
      %p106 = scmp.eq.s32.totalorder %s12, 1
      %p107 = por %p105, %p106
      %p108 = scmp.ne.s32.totalorder %s100, %s103
      %p109 = scmp.eq.s32.totalorder %s12, 0
      %p110 = por %p108, %p109
      %p111 = scmp.ne.s32.totalorder %s100, %s103
      %p112 = scmp.eq.s32.totalorder %s17, 1
      %p113 = por %p111, %p112
      %p114 = scmp.ne.s32.totalorder %s103, %s104
      %p115 = scmp.eq.s32.totalorder %s17, 0
      %p116 = por %p114, %p115
      %p117 = scmp.ne.s32.totalorder %s103, %s104
      %p118 = scmp.eq.s32.totalorder %s18, 1
      %p119 = por %p117, %p118
      %p121 = scmp.ne.s32.totalorder %s104, %s120
      %p122 = scmp.eq.s32.totalorder %s18, 0
      %p123 = por %p121, %p122
      %p124 = scmp.le.s32.totalorder 1, %s12
      %p125 = scmp.lt.s32.totalorder %s12, 3
      %p126 = pnand %p124, %p125
      %p127 = pneg %p126
      // Predicated region
      $region9: #{tpu_custom_call.1} parent=5 // pred_check
        _
      $region10: #{tpu_custom_call.1} parent=5 // pred_check_branch
        %129 = sbr.rel (%p126) target = $region12
      $region11: #{tpu_custom_call.1} parent=5 // pred_region
        %s130 = ssub.s32 %s12, 1
      $region12: #{tpu_custom_call.1} parent=5 // pred_fallthru
        _
      %p131 = scmp.lt.s32.totalorder %s12, 2
      // Predicated region
      $region13: #{tpu_custom_call.1} parent=5 // pred_check
        %p132 = pneg %p131
      $region14: #{tpu_custom_call.1} parent=5 // pred_check_branch
        %134 = sbr.rel (%p132) target = $region16
      $region15: #{tpu_custom_call.1} parent=5 // pred_region
        // Predicated region
        $region17: #{tpu_custom_call.1} parent=15 // pred_check
          %p135 = pneg %p32
        $region18: #{tpu_custom_call.1} parent=15 // pred_check_branch
          %137 = sbr.rel (%p135) target = $region20
        $region19: #{tpu_custom_call.1} parent=15 // pred_region
          %p138 = scmp.lt.s32.totalorder %s12, 1
          %s139 = scalar_select %p138, %s12, 1
          %s140 = smul.addr %s139, 8
          %s141 = scalar_lea.vmem %s0, %s140
        $region20: #{tpu_custom_call.1} parent=15 // pred_fallthru
          _
        // Predicated region
        $region21: #{tpu_custom_call.1} parent=15 // pred_check
          %p142 = pneg %p58
        $region22: #{tpu_custom_call.1} parent=15 // pred_check_branch
          %144 = sbr.rel (%p142) target = $region24
        $region23: #{tpu_custom_call.1} parent=15 // pred_region
          %p145 = scmp.lt.s32.totalorder %s12, 1
          %s146 = scalar_select %p145, %s12, 1
          %s147 = smul.addr %s146, 8
          %s148 = scalar_lea.vmem %s1, %s147
        $region24: #{tpu_custom_call.1} parent=15 // pred_fallthru
          _
        // Predicated region
        $region25: #{tpu_custom_call.1} parent=15 // pred_check
          %p149 = pneg %p84
        $region26: #{tpu_custom_call.1} parent=15 // pred_check_branch
          %151 = sbr.rel (%p149) target = $region28
        $region27: #{tpu_custom_call.1} parent=15 // pred_region
          %p152 = scmp.lt.s32.totalorder %s12, 1
          %s153 = scalar_select %p152, %s12, 1
          %s154 = scalar_lea.vmem %s2, %s153
        $region28: #{tpu_custom_call.1} parent=15 // pred_fallthru
          _
      $region16: #{tpu_custom_call.1} parent=5 // pred_fallthru
        _
      %p155 = scmp.le.s32.totalorder 1, %s12
      %p156 = scmp.lt.s32.totalorder %s12, 3
      %p157 = pnand %p155, %p156
      %p158 = pneg %p157
      // Predicated region
      $region29: #{tpu_custom_call.1} parent=5 // pred_check
        _
      $region30: #{tpu_custom_call.1} parent=5 // pred_check_branch
        %160 = sbr.rel (%p157) target = $region32
      $region31: #{tpu_custom_call.1} parent=5 // pred_region
        %s161 = ssub.s32 %s12, 1
        %p162 = scmp.lt.s32.totalorder %s17, 1
        %s163 = scalar_select %p162, %s17, 1
        %s164 = smul.addr %s163, 8
        %s165 = scalar_lea.vmem %s0, %s164
        %p166 = pneg %p38
        %p167 = pneg %p35
        %p168 = scmp.lt.s32.totalorder %s17, 1
        %s169 = scalar_select %p168, %s17, 1
        %s170 = smul.addr %s169, 8
        %s171 = scalar_lea.vmem %s1, %s170
        %p172 = pneg %p64
        %p173 = pneg %p61
        %p174 = scmp.lt.s32.totalorder %s17, 1
        %s175 = scalar_select %p174, %s17, 1
        %s176 = scalar_lea.vmem %s2, %s175
        %p177 = pneg %p90
        %p178 = pneg %p87
        %p179 = pneg %p116
        %p180 = pneg %p113
        %s181 = sand.u32 %s103, 1
        %s182 = scalar_lea.sflag [#allocation3], %s181
        %s183 = sand.u32 %s103, 1
        %s184 = smul.addr %s183, 8
        %s185 = scalar_lea.vmem [#allocation2], %s184
        %p186 = scmp.lt.s32.totalorder %s17, 1
        %s187 = scalar_select %p186, %s17, 1
        %s188 = smul.addr %s187, 8
        %s189 = scalar_lea.vmem %s0, %s188
        %p190 = scmp.lt.s32.totalorder %s17, 1
        %s191 = scalar_select %p190, %s17, 1
        %s192 = smul.addr %s191, 8
        %s193 = scalar_lea.vmem %s1, %s192
        %p194 = scmp.lt.s32.totalorder %s17, 1
        %s195 = scalar_select %p194, %s17, 1
        %s196 = scalar_lea.vmem %s2, %s195
        %v197 = vld [vmem:[%s189] sm:$0xff]
        %v198 = vld [vmem:[%s193] sm:$0xff]
        %vm199 = vcmp.gt.f32.partialorder %v198, 0.5
        %v200 = vld [vmem:[%s196] sm:$0x1]
        %vm201 = vcmp.gt.f32.partialorder %v200, 0.5
        %v202 = vsel %vm199, 1, 0
        %203 = vset.pattern.permute.xlu0 0
        %204 = vperm.xlu0 %203, %v202
        %v205 = vpop.permute.xlu0 %204
        %vm206 = vcmp.eq.s32.totalorder %v205, 1
        %v207 = vsel %vm201, 1, 0
        %v208 = vlaneseq
        %v209 = vshrl.u32 %v208, 7
        %v210 = vsub.s32 0, %v209
        %v211 = vrot.slane %v207, %v210
        %vm212 = vcmp.eq.s32.totalorder %v211, 1
        %vm213 = vmand %vm206, %vm212
        %v214 = vsel %vm213, %v197, -1e+12
        %vm215 = vcmask 130048
        %v216 = vsel %vm215, %v214, -inf
        %217 = vmax.xlane.f32.xlu0 %v216
        %v218 = vpop.xlane.xlu0 %217
        %v219 = vmax.f32 %v218, 0.0
        %v220 = vsub.f32 %v214, %v219
        %v221 = vmul.f32 %v220, 1.442695
        %v222 = vpow.pop %v221
        %v223 = vsel %vm215, %v222, 0.0
        %224 = vadd.xlane.f32.xlu0 %v223
        %v225 = vpop.xlane.xlu0 %224
        %v226 = vsub.f32 0.0, %v219
        %v227 = vmul.f32 %v226, 1.442695
        %v228 = vpow.pop %v227
        %v229 = vadd.f32 %v225, %v228
        %v230 = vlog2.pop %v229
        %v231 = vmul.f32 %v230, 0.6931472
        %v232 = vadd.f32 %v219, %v231
        %v233 = vsub.f32 %v214, %v232
        %v234 = vsub.f32 0.0, %v232
        %v235 = vsel %vm215, %v233, -inf
        %v236 = vrot.slane %v235, 4
        %v237 = vmax.f32 %v235, %v236
        %v238 = vrot.slane %v237, 2
        %v239 = vmax.f32 %v237, %v238
        %v240 = vrot.slane %v239, 1
        %v241 = vmax.f32 %v239, %v240
        %v242 = vmax.f32 %v241, 0.0
        %v243 = vsub.f32 %v233, %v242
        %v244 = vmul.f32 %v243, 1.442695
        %v245 = vpow.pop %v244
        %v246 = vsel %vm215, %v245, 0.0
        %v247 = vrot.slane %v246, 4
        %v248 = vadd.f32 %v246, %v247
        %v249 = vrot.slane %v248, 2
        %v250 = vadd.f32 %v248, %v249
        %v251 = vrot.slane %v250, 1
        %v252 = vadd.f32 %v250, %v251
        %v253 = vsub.f32 0.0, %v242
        %v254 = vmul.f32 %v253, 1.442695
        %v255 = vpow.pop %v254
        %v256 = vadd.f32 %v252, %v255
        %v257 = vlog2.pop %v256
        %v258 = vmul.f32 %v257, 0.6931472
        %v259 = vadd.f32 %v242, %v258
        %v260 = vsub.f32 %v233, %v259
        %v261 = vsub.f32 0.0, %v259
        %v262 = vsel %vm215, %v260, -inf
        %263 = vmax.xlane.f32.xlu0 %v262
        %v264 = vpop.xlane.xlu0 %263
        %v265 = vmax.f32 %v264, %v234
        %v266 = vsub.f32 %v260, %v265
        %v267 = vmul.f32 %v266, 1.442695
        %v268 = vpow.pop %v267
        %v269 = vsel %vm215, %v268, 0.0
        %270 = vadd.xlane.f32.xlu0 %v269
        %v271 = vpop.xlane.xlu0 %270
        %v272 = vsub.f32 %v234, %v265
        %v273 = vmul.f32 %v272, 1.442695
        %v274 = vpow.pop %v273
        %v275 = vadd.f32 %v271, %v274
        %v276 = vlog2.pop %v275
        %v277 = vmul.f32 %v276, 0.6931472
        %v278 = vadd.f32 %v265, %v277
        %v279 = vsub.f32 %v260, %v278
        %v280 = vsub.f32 %v234, %v278
        %v281 = vsel %vm215, %v279, -inf
        %v282 = vrot.slane %v281, 4
        %v283 = vmax.f32 %v281, %v282
        %v284 = vrot.slane %v283, 2
        %v285 = vmax.f32 %v283, %v284
        %v286 = vrot.slane %v285, 1
        %v287 = vmax.f32 %v285, %v286
        %v288 = vmax.f32 %v287, %v261
        %v289 = vsub.f32 %v279, %v288
        %v290 = vmul.f32 %v289, 1.442695
        %v291 = vpow.pop %v290
        %v292 = vsel %vm215, %v291, 0.0
        %v293 = vrot.slane %v292, 4
        %v294 = vadd.f32 %v292, %v293
        %v295 = vrot.slane %v294, 2
        %v296 = vadd.f32 %v294, %v295
        %v297 = vrot.slane %v296, 1
        %v298 = vadd.f32 %v296, %v297
        %v299 = vsub.f32 %v261, %v288
        %v300 = vmul.f32 %v299, 1.442695
        %v301 = vpow.pop %v300
        %v302 = vadd.f32 %v298, %v301
        %v303 = vlog2.pop %v302
        %v304 = vmul.f32 %v303, 0.6931472
        %v305 = vadd.f32 %v288, %v304
        %v306 = vsub.f32 %v279, %v305
        %v307 = vsub.f32 %v261, %v305
        %v308 = vsel %vm215, %v306, -inf
        %309 = vmax.xlane.f32.xlu0 %v308
        %v310 = vpop.xlane.xlu0 %309
        %v311 = vmax.f32 %v310, %v280
        %v312 = vsub.f32 %v306, %v311
        %v313 = vmul.f32 %v312, 1.442695
        %v314 = vpow.pop %v313
        %v315 = vsel %vm215, %v314, 0.0
        %316 = vadd.xlane.f32.xlu0 %v315
        %v317 = vpop.xlane.xlu0 %316
        %v318 = vsub.f32 %v280, %v311
        %v319 = vmul.f32 %v318, 1.442695
        %v320 = vpow.pop %v319
        %v321 = vadd.f32 %v317, %v320
        %v322 = vlog2.pop %v321
        %v323 = vmul.f32 %v322, 0.6931472
        %v324 = vadd.f32 %v311, %v323
        %v325 = vsub.f32 %v306, %v324
        %v326 = vsub.f32 %v280, %v324
        %v327 = vsel %vm215, %v325, -inf
        %v328 = vrot.slane %v327, 4
        %v329 = vmax.f32 %v327, %v328
        %v330 = vrot.slane %v329, 2
        %v331 = vmax.f32 %v329, %v330
        %v332 = vrot.slane %v331, 1
        %v333 = vmax.f32 %v331, %v332
        %v334 = vmax.f32 %v333, %v307
        %v335 = vsub.f32 %v325, %v334
        %v336 = vmul.f32 %v335, 1.442695
        %v337 = vpow.pop %v336
        %v338 = vsel %vm215, %v337, 0.0
        %v339 = vrot.slane %v338, 4
        %v340 = vadd.f32 %v338, %v339
        %v341 = vrot.slane %v340, 2
        %v342 = vadd.f32 %v340, %v341
        %v343 = vrot.slane %v342, 1
        %v344 = vadd.f32 %v342, %v343
        %v345 = vsub.f32 %v307, %v334
        %v346 = vmul.f32 %v345, 1.442695
        %v347 = vpow.pop %v346
        %v348 = vadd.f32 %v344, %v347
        %v349 = vlog2.pop %v348
        %v350 = vmul.f32 %v349, 0.6931472
        %v351 = vadd.f32 %v334, %v350
        %v352 = vsub.f32 %v325, %v351
        %v353 = vsub.f32 %v307, %v351
        %v354 = vsel %vm215, %v352, -inf
        %355 = vmax.xlane.f32.xlu0 %v354
        %v356 = vpop.xlane.xlu0 %355
        %v357 = vmax.f32 %v356, %v326
        %v358 = vsub.f32 %v352, %v357
        %v359 = vmul.f32 %v358, 1.442695
        %v360 = vpow.pop %v359
        %v361 = vsel %vm215, %v360, 0.0
        %362 = vadd.xlane.f32.xlu0 %v361
        %v363 = vpop.xlane.xlu0 %362
        %v364 = vsub.f32 %v326, %v357
        %v365 = vmul.f32 %v364, 1.442695
        %v366 = vpow.pop %v365
        %v367 = vadd.f32 %v363, %v366
        %v368 = vlog2.pop %v367
        %v369 = vmul.f32 %v368, 0.6931472
        %v370 = vadd.f32 %v357, %v369
        %v371 = vsub.f32 %v352, %v370
        %v372 = vsub.f32 %v326, %v370
        %v373 = vsel %vm215, %v371, -inf
        %v374 = vrot.slane %v373, 4
        %v375 = vmax.f32 %v373, %v374
        %v376 = vrot.slane %v375, 2
        %v377 = vmax.f32 %v375, %v376
        %v378 = vrot.slane %v377, 1
        %v379 = vmax.f32 %v377, %v378
        %v380 = vmax.f32 %v379, %v353
        %v381 = vsub.f32 %v371, %v380
        %v382 = vmul.f32 %v381, 1.442695
        %v383 = vpow.pop %v382
        %v384 = vsel %vm215, %v383, 0.0
        %v385 = vrot.slane %v384, 4
        %v386 = vadd.f32 %v384, %v385
        %v387 = vrot.slane %v386, 2
        %v388 = vadd.f32 %v386, %v387
        %v389 = vrot.slane %v388, 1
        %v390 = vadd.f32 %v388, %v389
        %v391 = vsub.f32 %v353, %v380
        %v392 = vmul.f32 %v391, 1.442695
        %v393 = vpow.pop %v392
        %v394 = vadd.f32 %v390, %v393
        %v395 = vlog2.pop %v394
        %v396 = vmul.f32 %v395, 0.6931472
        %v397 = vadd.f32 %v380, %v396
        %v398 = vsub.f32 %v371, %v397
        %v399 = vsub.f32 %v353, %v397
        %v400 = vsel %vm215, %v398, -inf
        %401 = vmax.xlane.f32.xlu0 %v400
        %v402 = vpop.xlane.xlu0 %401
        %v403 = vmax.f32 %v402, %v372
        %v404 = vsub.f32 %v398, %v403
        %v405 = vmul.f32 %v404, 1.442695
        %v406 = vpow.pop %v405
        %v407 = vsel %vm215, %v406, 0.0
        %408 = vadd.xlane.f32.xlu0 %v407
        %v409 = vpop.xlane.xlu0 %408
        %v410 = vsub.f32 %v372, %v403
        %v411 = vmul.f32 %v410, 1.442695
        %v412 = vpow.pop %v411
        %v413 = vadd.f32 %v409, %v412
        %v414 = vlog2.pop %v413
        %v415 = vmul.f32 %v414, 0.6931472
        %v416 = vadd.f32 %v403, %v415
        %v417 = vsub.f32 %v398, %v416
        %v418 = vsel %vm215, %v417, -inf
        %v419 = vrot.slane %v418, 4
        %v420 = vmax.f32 %v418, %v419
        %v421 = vrot.slane %v420, 2
        %v422 = vmax.f32 %v420, %v421
        %v423 = vrot.slane %v422, 1
        %v424 = vmax.f32 %v422, %v423
        %v425 = vmax.f32 %v424, %v399
        %v426 = vsub.f32 %v417, %v425
        %v427 = vmul.f32 %v426, 1.442695
        %v428 = vpow.pop %v427
        %v429 = vsel %vm215, %v428, 0.0
        %v430 = vrot.slane %v429, 4
        %v431 = vadd.f32 %v429, %v430
        %v432 = vrot.slane %v431, 2
        %v433 = vadd.f32 %v431, %v432
        %v434 = vrot.slane %v433, 1
        %v435 = vadd.f32 %v433, %v434
        %v436 = vsub.f32 %v399, %v425
        %v437 = vmul.f32 %v436, 1.442695
        %v438 = vpow.pop %v437
        %v439 = vadd.f32 %v435, %v438
        %v440 = vlog2.pop %v439
        %v441 = vmul.f32 %v440, 0.6931472
        %v442 = vadd.f32 %v425, %v441
        %v443 = vsub.f32 %v417, %v442
        %444 = vst.msk [vmem:[%s185] sm:$0xff] %vm215, %v443
        %s445 = sand.u32 %s103, 1
        %s446 = scalar_lea.sflag [#allocation3], %s445
        %s447 = sand.u32 %s103, 1
        %s448 = smul.addr %s447, 8
        %s449 = scalar_lea.vmem [#allocation2], %s448
        // Predicated region
        $region33: #{tpu_custom_call.1} parent=31 // pred_check
          %p450 = pneg %p113
        $region34: #{tpu_custom_call.1} parent=31 // pred_check_branch
          %452 = sbr.rel (%p450) target = $region36
        $region35: #{tpu_custom_call.1} parent=31 // pred_region
          %s454 = ssub.s32 128, 128
          %455 = vsyncadd %s446, %s454
          %s456 = smul.addr %s17, 128
          %s457 = scalar_lea.hbm %s3, %s456
          %s459 = sshll.u32 %s449, 4
          %s460 = int_to_ptr.vmem [resolvable:$true] %s459
          %462 = dma.vmem_to_hbm [thread:$0]  %s460, 128, %s457, %s446
        $region36: #{tpu_custom_call.1} parent=31 // pred_fallthru
          _
      $region32: #{tpu_custom_call.1} parent=5 // pred_fallthru
        _
      %p463 = scmp.le.s32.totalorder 2, %s12
      // Predicated region
      $region37: #{tpu_custom_call.1} parent=5 // pred_check
        %p464 = pneg %p463
      $region38: #{tpu_custom_call.1} parent=5 // pred_check_branch
        %466 = sbr.rel (%p464) target = $region40
      $region39: #{tpu_custom_call.1} parent=5 // pred_region
        %s467 = ssub.s32 %s12, 2
        // Predicated region
        $region41: #{tpu_custom_call.1} parent=39 // pred_check
          %p468 = pneg %p119
        $region42: #{tpu_custom_call.1} parent=39 // pred_check_branch
          %470 = sbr.rel (%p468) target = $region44
        $region43: #{tpu_custom_call.1} parent=39 // pred_region
          %s471 = sand.u32 %s104, 1
          %s472 = scalar_lea.sflag [#allocation3], %s471
          %s473 = sand.u32 %s104, 1
          %s474 = smul.addr %s473, 8
          %s475 = scalar_lea.vmem [#allocation2], %s474
          %476 = dma.done %s472, 128
        $region44: #{tpu_custom_call.1} parent=39 // pred_fallthru
          _
      $region40: #{tpu_custom_call.1} parent=5 // pred_fallthru
        _
    $region6: #{tpu_custom_call.1} parent=1 // loop_footer
      %s16 = sadd.s32 1, %s12
    $region7: #{tpu_custom_call.1} parent=1 // loop_footer_branch
      %11 = sbr.rel target = $region3
    $region8: #{tpu_custom_call.1} parent=1 // loop_exit
      _
    %477 = vsyncpa [#allocation3], 1
    %s478 = scalar_lea.sflag [#allocation3], 1
    %479 = vsyncpa %s478, 1

</llo_original>
